<compile_context>
chip_gen: v5e
topology: v5e:2x2
jax: 0.10.0
libtpu: 0.0.40
codegen_flags: <defaults>
</compile_context>

<pallas_src>
import functools

import jax
import jax.numpy as jnp
from jax.experimental import pallas as pl
from jax.experimental.pallas import tpu as pltpu


def _round_up(v, m):
    return ((v + m - 1) // m) * m


def _fused_mlp_kernel(*refs):
    """refs = (x_ref, w0_ref, b0_ref, w1_ref, b1_ref, ..., o_ref).

    The whole layer chain runs inside one kernel body: intermediates stay in
    vregs/VMEM, only the final activation tile is stored back to HBM.
    """
    x_ref = refs[0]
    o_ref = refs[-1]
    wb_refs = refs[1:-1]

    h = x_ref[...]
    for i in range(0, len(wb_refs), 2):
        w = wb_refs[i][...]
        b = wb_refs[i + 1][...]  # bias kept in f32
        # MXU matmul with f32 accumulation; inputs cast to the weight dtype
        # (f32 or bf16 depending on the wrapper's compute_dtype).
        h = jnp.dot(h.astype(w.dtype), w, preferred_element_type=jnp.float32) + b
    o_ref[...] = h.astype(o_ref.dtype)


@functools.partial(jax.jit, static_argnames=("max_tm", "compute_dtype"))
def torch_model_forward(x, params, *, max_tm=512, compute_dtype=jnp.float32):
    """Fused forward pass of TorchModel: x -> Linear_0 -> ... -> Linear_{L-1}."""
    M, K0 = x.shape
    n_layers = len(params)
    dims = [K0] + [w.shape[1] for w, _ in params]
    out_dtype = jnp.float32

    # ---- batch tiling: cdiv grid (no materialized padding), >=2 tiles when M permits
    # (keeps both v7x TensorCores busy), tile rounded up to the 8-row sublane group.
    if M >= 16:
        n_tiles = max(pl.cdiv(M, max_tm), 2)
    else:
        n_tiles = 1
    tm = min(max_tm, _round_up(pl.cdiv(M, n_tiles), 8))
    grid = pl.cdiv(M, tm)

    # ---- dtype at the pallas_call boundary; bias stays f32 for exact f32 add.
    csize = jnp.dtype(compute_dtype).itemsize
    x_in = x.astype(compute_dtype)
    wb_in = []
    for w, b in params:
        wb_in.append(w.astype(compute_dtype))
        wb_in.append(b.astype(jnp.float32).reshape(1, -1))

    # ---- BlockSpecs: activation tiled over batch only; weights/biases fully
    # VMEM-resident and grid-invariant (fetched once).
    in_specs = [pl.BlockSpec((tm, K0), lambda i: (i, 0))]
    for li in range(n_layers):
        in_specs.append(pl.BlockSpec((dims[li], dims[li + 1]), lambda i: (0, 0)))
        in_specs.append(pl.BlockSpec((1, dims[li + 1]), lambda i: (0, 0)))
    out_spec = pl.BlockSpec((tm, dims[-1]), lambda i: (i, 0))

    # ---- advisory cost estimate (true, unpadded sizes).
    flops = sum(2 * M * dims[li] * dims[li + 1] for li in range(n_layers))
    bytes_accessed = (
        M * K0 * csize
        + sum(din * dout * csize + dout * 4 for din, dout in zip(dims[:-1], dims[1:]))
        + M * dims[-1] * jnp.dtype(out_dtype).itemsize
    )
    cost = pl.CostEstimate(flops=flops, transcendentals=0, bytes_accessed=bytes_accessed)

    # ---- explicit VMEM accounting (double-buffered x/out tiles, 2x resident weights,
    # headroom for in-kernel intermediates); only raise the scoped limit when needed.
    vmem_needed = (
        2 * tm * K0 * csize
        + 2 * tm * dims[-1] * jnp.dtype(out_dtype).itemsize
        + 2 * sum(din * dout * csize + dout * 4 for din, dout in zip(dims[:-1], dims[1:]))
        + 4 * tm * max(dims) * 4
    )
    vmem_limit = None
    if vmem_needed > 32 * 1024 * 1024:
        vmem_limit = int(min(vmem_needed * 1.25, 128 * 1024 * 1024))

    return pl.pallas_call(
        _fused_mlp_kernel,
        out_shape=jax.ShapeDtypeStruct((M, dims[-1]), out_dtype),
        grid_spec=pltpu.PrefetchScalarGridSpec(
            num_scalar_prefetch=0,
            grid=(grid,),
            in_specs=in_specs,
            out_specs=out_spec,
        ),
        compiler_params=pltpu.CompilerParams(
            dimension_semantics=("parallel",),
            vmem_limit_bytes=vmem_limit,
        ),
        cost_estimate=cost,
    )(x_in, *wb_in)


def init_params(layer_units, key):
    """Deterministic nn.Linear-style init: U(-1/sqrt(fan_in), 1/sqrt(fan_in))."""
    params = []
    for i in range(len(layer_units) - 1):
        fan_in, fan_out = layer_units[i], layer_units[i + 1]
        key, kw, kb = jax.random.split(key, 3)
        bound = 1.0 / jnp.sqrt(fan_in)
        # stored as (in, out) == PyTorch weight.T
        w = jax.random.uniform(kw, (fan_in, fan_out), jnp.float32, -bound, bound)
        b = jax.random.uniform(kb, (1, fan_out), jnp.float32, -bound, bound)
        params.append((w, b))
    return params


def reference_forward(x, params):
    for w, b in params:
        x = x @ w + b
    return x


if __name__ == "__main__":
    layer_units = (32, 64, 48, 16)  # TorchModel(32, 64, 48, 16)
    batch = 8

    key = jax.random.PRNGKey(0)
    key, kx = jax.random.split(key)
    x = jax.random.normal(kx, (batch, layer_units[0]), jnp.float32)
    params = init_params(layer_units, key)

    # f32 path, tiny shipped config (single grid step, no padding anywhere).
    out = jax.block_until_ready(torch_model_forward(x, params))
    ref = reference_forward(x, params)
    assert out.shape == (batch, layer_units[-1])
    assert jnp.allclose(out, ref, atol=1e-5, rtol=1e-5)

    # Larger ragged batch: exercises cdiv gridding, >=2 parallel tiles and the
    # masked partial last tile (60 rows -> tm=32, grid=2).
    xb = jax.random.normal(jax.random.PRNGKey(1), (60, layer_units[0]), jnp.float32)
    refb = reference_forward(xb, params)
    outb = jax.block_until_ready(torch_model_forward(xb, params))
    assert outb.shape == (60, layer_units[-1])
    assert jnp.allclose(outb, refb, atol=1e-5, rtol=1e-5)

    # bf16 MXU path (v6e/v7x native); f32 accumulation, loose tolerance vs f32 reference.
    outb_bf16 = jax.block_until_ready(
        torch_model_forward(xb, params, compute_dtype=jnp.bfloat16)
    )
    assert jnp.allclose(outb_bf16, refb, atol=5e-2, rtol=5e-2)

    print("KERNEL_OK")
</pallas_src>

<mosaic_0001>
module attributes {stable_mosaic.version = 11 : i64} {
  func.func @_fused_mlp_kernel(%arg0: i32, %arg1: memref<8x32xf32, #tpu.memory_space<vmem>>, %arg2: memref<32x64xf32, #tpu.memory_space<vmem>>, %arg3: memref<1x64xf32, #tpu.memory_space<vmem>>, %arg4: memref<64x48xf32, #tpu.memory_space<vmem>>, %arg5: memref<1x48xf32, #tpu.memory_space<vmem>>, %arg6: memref<48x16xf32, #tpu.memory_space<vmem>>, %arg7: memref<1x16xf32, #tpu.memory_space<vmem>>, %arg8: memref<8x16xf32, #tpu.memory_space<vmem>>) attributes {dimension_semantics = [#tpu.dimension_semantics<parallel>], iteration_bounds = array<i64: 1>, scalar_prefetch = 0 : i64, scratch_operands = 0 : i64, tpu.core_type = #tpu.core_type<tc>, window_params = [{transform_indices = @transform_0, window_bounds = array<i64: 8, 32>}, {pipeline_mode = #tpu.pipeline_mode<synchronous>, transform_indices = @transform_1, window_bounds = array<i64: 32, 64>}, {pipeline_mode = #tpu.pipeline_mode<synchronous>, transform_indices = @transform_2, window_bounds = array<i64: 1, 64>}, {pipeline_mode = #tpu.pipeline_mode<synchronous>, transform_indices = @transform_3, window_bounds = array<i64: 64, 48>}, {pipeline_mode = #tpu.pipeline_mode<synchronous>, transform_indices = @transform_4, window_bounds = array<i64: 1, 48>}, {pipeline_mode = #tpu.pipeline_mode<synchronous>, transform_indices = @transform_5, window_bounds = array<i64: 48, 16>}, {pipeline_mode = #tpu.pipeline_mode<synchronous>, transform_indices = @transform_6, window_bounds = array<i64: 1, 16>}, {transform_indices = @transform_7, window_bounds = array<i64: 8, 16>}]} {
    %c0 = arith.constant 0 : index
    %c0_0 = arith.constant 0 : index
    %0 = vector.load %arg1[%c0, %c0_0] : memref<8x32xf32, #tpu.memory_space<vmem>>, vector<8x32xf32>
    %c0_1 = arith.constant 0 : index
    %c0_2 = arith.constant 0 : index
    %1 = vector.load %arg2[%c0_1, %c0_2] : memref<32x64xf32, #tpu.memory_space<vmem>>, vector<32x64xf32>
    %c0_3 = arith.constant 0 : index
    %c0_4 = arith.constant 0 : index
    %2 = vector.load %arg3[%c0_3, %c0_4] : memref<1x64xf32, #tpu.memory_space<vmem>>, vector<1x64xf32>
    %cst = arith.constant dense<0.000000e+00> : vector<8x64xf32>
    %3 = tpu.matmul %0, %1, %cst {dimension_numbers = #tpu.dot_dimension_numbers<[1], [0], [0], [1], [0, 0, 1, 1], [], []>} : vector<8x32xf32>, vector<32x64xf32>, vector<8x64xf32> -> vector<8x64xf32>
    %4 = vector.broadcast %2 : vector<1x64xf32> to vector<8x64xf32>
    %5 = arith.addf %3, %4 : vector<8x64xf32>
    %c0_5 = arith.constant 0 : index
    %c0_6 = arith.constant 0 : index
    %6 = vector.load %arg4[%c0_5, %c0_6] : memref<64x48xf32, #tpu.memory_space<vmem>>, vector<64x48xf32>
    %c0_7 = arith.constant 0 : index
    %c0_8 = arith.constant 0 : index
    %7 = vector.load %arg5[%c0_7, %c0_8] : memref<1x48xf32, #tpu.memory_space<vmem>>, vector<1x48xf32>
    %cst_9 = arith.constant dense<0.000000e+00> : vector<8x48xf32>
    %8 = tpu.matmul %5, %6, %cst_9 {dimension_numbers = #tpu.dot_dimension_numbers<[1], [0], [0], [1], [0, 0, 1, 1], [], []>} : vector<8x64xf32>, vector<64x48xf32>, vector<8x48xf32> -> vector<8x48xf32>
    %9 = vector.broadcast %7 : vector<1x48xf32> to vector<8x48xf32>
    %10 = arith.addf %8, %9 : vector<8x48xf32>
    %c0_10 = arith.constant 0 : index
    %c0_11 = arith.constant 0 : index
    %11 = vector.load %arg6[%c0_10, %c0_11] : memref<48x16xf32, #tpu.memory_space<vmem>>, vector<48x16xf32>
    %c0_12 = arith.constant 0 : index
    %c0_13 = arith.constant 0 : index
    %12 = vector.load %arg7[%c0_12, %c0_13] : memref<1x16xf32, #tpu.memory_space<vmem>>, vector<1x16xf32>
    %cst_14 = arith.constant dense<0.000000e+00> : vector<8x16xf32>
    %13 = tpu.matmul %10, %11, %cst_14 {dimension_numbers = #tpu.dot_dimension_numbers<[1], [0], [0], [1], [0, 0, 1, 1], [], []>} : vector<8x48xf32>, vector<48x16xf32>, vector<8x16xf32> -> vector<8x16xf32>
    %14 = vector.broadcast %12 : vector<1x16xf32> to vector<8x16xf32>
    %15 = arith.addf %13, %14 : vector<8x16xf32>
    %c0_15 = arith.constant 0 : index
    %c0_16 = arith.constant 0 : index
    %16 = vector.load %arg8[%c0_15, %c0_16] : memref<8x16xf32, #tpu.memory_space<vmem>>, vector<8x16xf32>
    tpu.vector_store %arg8[%c0_15, %c0_16], %15 {strides = array<i32>} : memref<8x16xf32, #tpu.memory_space<vmem>>, vector<8x16xf32>,
    return
  }
  func.func @transform_0(%arg0: i32) -> (i32, i32) {
    %c0_i32 = arith.constant 0 : i32
    %c0_i32_0 = arith.constant 0 : i32
    return %arg0, %c0_i32 : i32, i32
  }
  func.func @transform_1(%arg0: i32) -> (i32, i32) {
    %c0_i32 = arith.constant 0 : i32
    %c0_i32_0 = arith.constant 0 : i32
    %c0_i32_1 = arith.constant 0 : i32
    return %c0_i32, %c0_i32_0 : i32, i32
  }
  func.func @transform_2(%arg0: i32) -> (i32, i32) {
    %c0_i32 = arith.constant 0 : i32
    %c0_i32_0 = arith.constant 0 : i32
    %c0_i32_1 = arith.constant 0 : i32
    return %c0_i32, %c0_i32_0 : i32, i32
  }
  func.func @transform_3(%arg0: i32) -> (i32, i32) {
    %c0_i32 = arith.constant 0 : i32
    %c0_i32_0 = arith.constant 0 : i32
    %c0_i32_1 = arith.constant 0 : i32
    return %c0_i32, %c0_i32_0 : i32, i32
  }
  func.func @transform_4(%arg0: i32) -> (i32, i32) {
    %c0_i32 = arith.constant 0 : i32
    %c0_i32_0 = arith.constant 0 : i32
    %c0_i32_1 = arith.constant 0 : i32
    return %c0_i32, %c0_i32_0 : i32, i32
  }
  func.func @transform_5(%arg0: i32) -> (i32, i32) {
    %c0_i32 = arith.constant 0 : i32
    %c0_i32_0 = arith.constant 0 : i32
    %c0_i32_1 = arith.constant 0 : i32
    return %c0_i32, %c0_i32_0 : i32, i32
  }
  func.func @transform_6(%arg0: i32) -> (i32, i32) {
    %c0_i32 = arith.constant 0 : i32
    %c0_i32_0 = arith.constant 0 : i32
    %c0_i32_1 = arith.constant 0 : i32
    return %c0_i32, %c0_i32_0 : i32, i32
  }
  func.func @transform_7(%arg0: i32) -> (i32, i32) {
    %c0_i32 = arith.constant 0 : i32
    %c0_i32_0 = arith.constant 0 : i32
    return %arg0, %c0_i32 : i32, i32
  }
}

</mosaic_0001>

<llo_original>
// kernel: torch_model_forward.1
$region0: #{torch_model_forward.1}
  #allocation0 [shape = 'u32[]', space=smem, size = 0x4, offset = 0x4, fixed_abs, tag = 'smem constant byte address 0x4 - core index']
  #allocation1 [shape = 'u32[72,128]{1,0:T(1,128)}', space=vmem, size = 0x9000, scoped, tag = 'internal scratch']
  %s0 = inlined_call_operand.vmem [shape: f32[8,32], index: 0, kind: input, shape index: {}]
  %s1 = inlined_call_operand.vmem [shape: f32[32,64], index: 1, kind: input, shape index: {}]
  %s2 = inlined_call_operand.vmem [shape: f32[1,64], index: 2, kind: input, shape index: {}]
  %s3 = inlined_call_operand.vmem [shape: f32[64,48], index: 3, kind: input, shape index: {}]
  %s4 = inlined_call_operand.vmem [shape: f32[1,48], index: 4, kind: input, shape index: {}]
  %s5 = inlined_call_operand.vmem [shape: f32[48,16], index: 5, kind: input, shape index: {}]
  %s6 = inlined_call_operand.vmem [shape: f32[1,16], index: 6, kind: input, shape index: {}]
  %s7 = inlined_call_operand.hbm [shape: f32[8,16], index: 7, kind: output, shape index: {}]
  %s8 = sld [smem:[#allocation0]]
  $region38: #{torch_model_forward.1} parent=0
    _
  %s10 = ssub.s32 1, %s8
  %s11 = scalar_select 0, %s10, %s8
  $region1: #{torch_model_forward.1} parent=0
    #allocation2 [shape = 'u8[4096]{0}', space=vmem, size = 0x1000, scoped, tag = 'output window, operand 0, single buffered']
    #allocation3 [shape = 's32[1]{0}', space=sflag, size = 0x4, scoped, tag = 'scoped memory for torch_model_forward.1']
    %12 = vsyncpa [#allocation3], 0
    // Predicated region
    $region2: #{torch_model_forward.1} parent=1 // pred_check
      _
    $region3: #{torch_model_forward.1} parent=1 // pred_check_branch
      %14 = sbr.rel (0) target = $region5
    $region4: #{torch_model_forward.1} parent=1 // pred_region
      _
    $region5: #{torch_model_forward.1} parent=1 // pred_fallthru
      _
    // Predicated region
    $region6: #{torch_model_forward.1} parent=1 // pred_check
      _
    $region7: #{torch_model_forward.1} parent=1 // pred_check_branch
      %16 = sbr.rel (0) target = $region9
    $region8: #{torch_model_forward.1} parent=1 // pred_region
      _
    $region9: #{torch_model_forward.1} parent=1 // pred_fallthru
      _
    // Predicated region
    $region10: #{torch_model_forward.1} parent=1 // pred_check
      _
    $region11: #{torch_model_forward.1} parent=1 // pred_check_branch
      %18 = sbr.rel (0) target = $region13
    $region12: #{torch_model_forward.1} parent=1 // pred_region
      _
    $region13: #{torch_model_forward.1} parent=1 // pred_fallthru
      _
    // Predicated region
    $region14: #{torch_model_forward.1} parent=1 // pred_check
      _
    $region15: #{torch_model_forward.1} parent=1 // pred_check_branch
      %20 = sbr.rel (0) target = $region17
    $region16: #{torch_model_forward.1} parent=1 // pred_region
      _
    $region17: #{torch_model_forward.1} parent=1 // pred_fallthru
      _
    // Predicated region
    $region18: #{torch_model_forward.1} parent=1 // pred_check
      _
    $region19: #{torch_model_forward.1} parent=1 // pred_check_branch
      %22 = sbr.rel (0) target = $region21
    $region20: #{torch_model_forward.1} parent=1 // pred_region
      _
    $region21: #{torch_model_forward.1} parent=1 // pred_fallthru
      _
    // Predicated region
    $region22: #{torch_model_forward.1} parent=1 // pred_check
      _
    $region23: #{torch_model_forward.1} parent=1 // pred_check_branch
      %24 = sbr.rel (0) target = $region25
    $region24: #{torch_model_forward.1} parent=1 // pred_region
      _
    $region25: #{torch_model_forward.1} parent=1 // pred_fallthru
      _
    // Predicated region
    $region26: #{torch_model_forward.1} parent=1 // pred_check
      _
    $region27: #{torch_model_forward.1} parent=1 // pred_check_branch
      %26 = sbr.rel (0) target = $region29
    $region28: #{torch_model_forward.1} parent=1 // pred_region
      _
    $region29: #{torch_model_forward.1} parent=1 // pred_fallthru
      _
    %v27 = vld [vmem:[%s0] sm:$0xff]
    %v28 = vld [vmem:[%s1] sm:$0xff]
    %v29 = vld [vmem:[%s1 + $0x8] sm:$0xff]
    %v30 = vld [vmem:[%s1 + $0x10] sm:$0xff]
    %v31 = vld [vmem:[%s1 + $0x18] sm:$0xff]
    %v32 = vld [vmem:[%s2] sm:$0x1]
    %v34 = vperm.slane %v32, 0
    %vm36 = vcmask 261120
    %v38 = vsel %vm36, %v27, 0
    %40 = vmatpush.msra.mxu0 0.0
    %41 = vmatpush.msra.mxu0 0.0
    %42 = vmatpush.msra.mxu0 0.0
    %43 = vmatpush.msra.mxu0 0.0
    %44 = vmatpush.msra.mxu0 0.0
    %45 = vmatpush.msra.mxu0 0.0
    %46 = vmatpush.msra.mxu0 0.0
    %47 = vmatpush.msra.mxu0 0.0
    %48 = vmatpush.msra.mxu0 0.0
    %49 = vmatpush.msra.mxu0 0.0
    %50 = vmatpush.msra.mxu0 0.0
    %51 = vmatpush.msra.mxu0 0.0
    %52 = vmatpush.msra.mxu0 %v31
    %53 = vmatpush.msra.mxu0 %v30
    %54 = vmatpush.msra.mxu0 %v29
    %55 = vmatpush.msra.mxu0 %v28
    %56 = vmatmul.f32.gmra.mxu0 %v38
    %v57 = vpop.f32.mrf.mxu0
    %v58 = vadd.f32 %v34, %v57
    %59 = vdwg.mxu0
    %v60 = vld [vmem:[%s3] sm:$0xff]
    %v61 = vld [vmem:[%s3 + $0x8] sm:$0xff]
    %v62 = vld [vmem:[%s3 + $0x10] sm:$0xff]
    %v63 = vld [vmem:[%s3 + $0x18] sm:$0xff]
    %v64 = vld [vmem:[%s3 + $0x20] sm:$0xff]
    %v65 = vld [vmem:[%s3 + $0x28] sm:$0xff]
    %v66 = vld [vmem:[%s3 + $0x30] sm:$0xff]
    %v67 = vld [vmem:[%s3 + $0x38] sm:$0xff]
    %v68 = vld [vmem:[%s4] sm:$0x1]
    %v70 = vperm.slane %v68, 0
    %vm72 = vcmask 523264
    %v74 = vsel %vm72, %v58, 0
    %76 = vmatpush.msra.mxu0 0.0
    %77 = vmatpush.msra.mxu0 0.0
    %78 = vmatpush.msra.mxu0 0.0
    %79 = vmatpush.msra.mxu0 0.0
    %80 = vmatpush.msra.mxu0 0.0
    %81 = vmatpush.msra.mxu0 0.0
    %82 = vmatpush.msra.mxu0 0.0
    %83 = vmatpush.msra.mxu0 0.0
    %84 = vmatpush.msra.mxu0 %v67
    %85 = vmatpush.msra.mxu0 %v66
    %86 = vmatpush.msra.mxu0 %v65
    %87 = vmatpush.msra.mxu0 %v64
    %88 = vmatpush.msra.mxu0 %v63
    %89 = vmatpush.msra.mxu0 %v62
    %90 = vmatpush.msra.mxu0 %v61
    %91 = vmatpush.msra.mxu0 %v60
    %92 = vmatmul.f32.gmra.mxu0 %v74
    %v93 = vpop.f32.mrf.mxu0
    %v94 = vadd.f32 %v70, %v93
    %95 = vdwg.mxu0
    %v96 = vld [vmem:[%s5] sm:$0xff]
    %v97 = vld [vmem:[%s5 + $0x8] sm:$0xff]
    %v98 = vld [vmem:[%s5 + $0x10] sm:$0xff]
    %v99 = vld [vmem:[%s5 + $0x18] sm:$0xff]
    %v100 = vld [vmem:[%s5 + $0x20] sm:$0xff]
    %v101 = vld [vmem:[%s5 + $0x28] sm:$0xff]
    %v102 = vld [vmem:[%s6] sm:$0x1]
    %v104 = vperm.slane %v102, 0
    %vm106 = vcmask 392192
    %v108 = vsel %vm106, %v94, 0
    %110 = vmatpush.msra.mxu0 0.0
    %111 = vmatpush.msra.mxu0 0.0
    %112 = vmatpush.msra.mxu0 0.0
    %113 = vmatpush.msra.mxu0 0.0
    %114 = vmatpush.msra.mxu0 0.0
    %115 = vmatpush.msra.mxu0 0.0
    %116 = vmatpush.msra.mxu0 0.0
    %117 = vmatpush.msra.mxu0 0.0
    %118 = vmatpush.msra.mxu0 0.0
    %119 = vmatpush.msra.mxu0 0.0
    %120 = vmatpush.msra.mxu0 %v101
    %121 = vmatpush.msra.mxu0 %v100
    %122 = vmatpush.msra.mxu0 %v99
    %123 = vmatpush.msra.mxu0 %v98
    %124 = vmatpush.msra.mxu0 %v97
    %125 = vmatpush.msra.mxu0 %v96
    %126 = vmatmul.f32.gmra.mxu0 %v108
    %v127 = vpop.f32.mrf.mxu0
    %v128 = vadd.f32 %v104, %v127
    %129 = vdwg.mxu0
    %vm130 = vcmask 130048
    %131 = vst.msk [vmem:[#allocation2] sm:$0xff] %vm130, %v128
    // Predicated region
    $region30: #{torch_model_forward.1} parent=1 // pred_check
      _
    $region31: #{torch_model_forward.1} parent=1 // pred_check_branch
      %133 = sbr.rel (0) target = $region33
    $region32: #{torch_model_forward.1} parent=1 // pred_region
      %135 = vsyncadd [#allocation3], 0
      %s137 = sshll.u32 [#allocation2], 4
      %s138 = int_to_ptr.vmem [resolvable:$true] %s137
      %s139 = sshll.u32 %s7, 4
      %s140 = int_to_ptr.hbm [resolvable:$true] %s139
      %142 = dma.vmem_to_hbm [thread:$0]  %s138, 128, %s140, [#allocation3]
    $region33: #{torch_model_forward.1} parent=1 // pred_fallthru
      _
    // Predicated region
    $region34: #{torch_model_forward.1} parent=1 // pred_check
      _
    $region35: #{torch_model_forward.1} parent=1 // pred_check_branch
      %144 = sbr.rel (0) target = $region37
    $region36: #{torch_model_forward.1} parent=1 // pred_region
      %146 = dma.done [#allocation3], 128
    $region37: #{torch_model_forward.1} parent=1 // pred_fallthru
      _
    %147 = vsyncpa [#allocation3], 1

</llo_original>
